<compile_context>
chip_gen: v6e
topology: v6e:2x2x1
jax: 0.10.0
libtpu: 0.0.40
codegen_flags: <defaults>
</compile_context>

<pallas_src>
from typing import List, Optional

import jax
import jax.numpy as jnp
from jax.experimental import pallas as pl
from jax.experimental.pallas import tpu as pltpu


# ----------------------------------------------------------------------------
# Kernel
# ----------------------------------------------------------------------------
def _make_swav_factored_kernel(vz: int, vq: int, exclude_diag: bool):
    """Build the per-batch-tile kernel.

    Block layout:
      z_ref : (vz, Nb, Cp)  high-resolution views (logits).
      q_ref : (vq, Nb, Cp)  targets; when exclude_diag the first vz entries are
                            the low views aligned with the high view they are
                            excluded against, the rest are queue views.
      out_ref: (1, 1, 128)  per-tile partial sum broadcast across lanes.
    """

    def kernel(z_ref, q_ref, out_ref):
        nb = z_ref.shape[1]
        cp = z_ref.shape[2]

        # ---- q-view statistics (each q view loaded once) -------------------
        q_rowsum = []                                    # Qs_j per row, (Nb, 1)
        q_all = jnp.zeros((nb, cp), jnp.float32)         # sum_j q_j, (Nb, Cp)
        for j in range(vq):
            qj = q_ref[j].astype(jnp.float32)
            q_rowsum.append(jnp.sum(qj, axis=-1, keepdims=True))
            q_all = q_all + qj
        qs_all = q_rowsum[0]
        for j in range(1, vq):
            qs_all = qs_all + q_rowsum[j]                # (Nb, 1)

        # ---- z-view statistics + factored pair terms ------------------------
        term1 = jnp.zeros((nb, 1), jnp.float32)   # sum_i S_i * (QsAll - Qs_i)
        diag = jnp.zeros((nb, 1), jnp.float32)    # sum_i sum_c z_i * low_i
        z_all = jnp.zeros((nb, cp), jnp.float32)  # sum_i z_i
        for i in range(vz):
            zi = z_ref[i].astype(jnp.float32)
            m = jnp.max(zi, axis=-1, keepdims=True)
            lse = jnp.log(jnp.sum(jnp.exp(zi - m), axis=-1, keepdims=True))
            s_i = m + lse                                 # logsumexp rows
            if exclude_diag:
                term1 = term1 + s_i * (qs_all - q_rowsum[i])
                li = q_ref[i].astype(jnp.float32)         # paired low view i
                diag = diag + jnp.sum(zi * li, axis=-1, keepdims=True)
            else:
                term1 = term1 + s_i * qs_all
            z_all = z_all + zi

        cross = jnp.sum(z_all * q_all, axis=-1, keepdims=True)   # (Nb, 1)
        per_row = term1 - cross + diag                            # (Nb, 1)

        # Single per-tile reduction, written to a lane-dense 128-wide block.
        tile_sum = jnp.sum(per_row)
        out_ref[...] = jnp.full((1, 1, 128), tile_sum, dtype=jnp.float32)

    return kernel


# ----------------------------------------------------------------------------
# Tiling helpers
# ----------------------------------------------------------------------------
def _round_up(x: int, m: int) -> int:
    return (x + m - 1) // m * m


def _sublane_granule(itemsize: int) -> int:
    if itemsize >= 4:
        return 8
    if itemsize == 2:
        return 16
    return 32


def _vmem_limit_bytes() -> int:
    """Per-generation VMEM limit: ~3/4 of physical, capped at 96 MiB."""
    try:
        cap = int(pltpu.get_tpu_info().vmem_capacity_bytes)
    except Exception:  # emulator / unknown backend
        cap = 64 * 1024 * 1024
    return min(96 * 1024 * 1024, cap * 3 // 4)


def _choose_batch_tile(n: int, cp: int, vz: int, vq: int,
                       itemsize: int, vmem_limit: int) -> int:
    """Rows per batch tile.  Budget covers the double-buffered input blocks
    plus ~6 live (Nb, Cp) f32 in-kernel temporaries (astype/exp/accumulators)."""
    granule = _sublane_granule(itemsize)
    per_row = 2 * (vz + vq) * cp * itemsize + 6 * cp * 4
    budget = int(vmem_limit * 0.6)
    max_rows = max(granule, (budget // per_row) // granule * granule)
    return min(max_rows, _round_up(n, granule))


# ----------------------------------------------------------------------------
# pallas_call wrapper
# ----------------------------------------------------------------------------
def _swav_ce_total(z_unique: jnp.ndarray, q_unique: jnp.ndarray,
                   exclude_diag: bool) -> jnp.ndarray:
    """Sum over all pairs and rows of the soft-target cross entropy.

    z_unique: (Vz, N, C) high views; q_unique: (Vq, N, C) low(+queue) views.
    Returns a scalar; caller divides by N * pair_count.
    """
    vz, n, c = map(int, z_unique.shape)
    vq = int(q_unique.shape[0])

    cp = _round_up(c, 128)
    itemsize = max(jnp.dtype(z_unique.dtype).itemsize,
                   jnp.dtype(q_unique.dtype).itemsize)
    vmem_limit = _vmem_limit_bytes()
    nb = _choose_batch_tile(n, cp, vz, vq, itemsize, vmem_limit)
    n_pad = _round_up(n, nb)
    nt = n_pad // nb

    # Pad prototypes to a lane-dense multiple of 128 and the batch to a
    # multiple of the tile.  z pads with a large negative (max / lse / q*z
    # unaffected), q pads with 0 (padded rows/lanes contribute exactly 0).
    z_pad_val = -1e9 if jnp.issubdtype(z_unique.dtype, jnp.floating) else 0
    z_p = jnp.pad(z_unique, ((0, 0), (0, n_pad - n), (0, cp - c)),
                  constant_values=z_pad_val)
    q_p = jnp.pad(q_unique, ((0, 0), (0, n_pad - n), (0, cp - c)),
                  constant_values=0)

    kernel = _make_swav_factored_kernel(vz, vq, exclude_diag)
    out = pl.pallas_call(
        kernel,
        out_shape=jax.ShapeDtypeStruct((nt, 1, 128), jnp.float32),
        grid=(nt,),
        in_specs=[
            pl.BlockSpec((vz, nb, cp), lambda t: (0, t, 0)),
            pl.BlockSpec((vq, nb, cp), lambda t: (0, t, 0)),
        ],
        out_specs=pl.BlockSpec((1, 1, 128), lambda t: (t, 0, 0)),
        compiler_params=pltpu.CompilerParams(
            dimension_semantics=("parallel",),   # shard tiles across v7x TCs
            vmem_limit_bytes=vmem_limit,
        ),
    )(z_p, q_p)

    return jnp.sum(out[:, 0, 0])


def swav_loss(
    high_resolution_outputs: List[jnp.ndarray],
    low_resolution_outputs: List[jnp.ndarray],
    queue_outputs: Optional[List[jnp.ndarray]] = None,
) -> jnp.ndarray:
    """JAX/Pallas equivalent of SwaVLoss.forward."""
    num_views = len(high_resolution_outputs)
    n_queue = len(queue_outputs) if queue_outputs is not None else 0
    count = num_views * (num_views - 1) + num_views * n_queue
    if count == 0:
        return jnp.float32(0.0)

    exclude_diag = num_views >= 2
    z_views = list(high_resolution_outputs)
    if exclude_diag:
        # Mirrors the PyTorch indexing low_resolution_outputs[j], j<num_views.
        q_views = [low_resolution_outputs[j] for j in range(num_views)]
    else:
        q_views = []
    if queue_outputs is not None:
        q_views = q_views + list(queue_outputs)

    # Stack only the UNIQUE views once, in their native dtype (pass bf16 views
    # to halve HBM traffic; all math is f32 inside the kernel).
    z_unique = jnp.stack(z_views, axis=0)    # (Vz, N, C)
    q_unique = jnp.stack(q_views, axis=0)    # (Vq, N, C)

    n = z_unique.shape[1]
    total = _swav_ce_total(z_unique, q_unique, exclude_diag)
    return total / jnp.float32(n * count)


# ----------------------------------------------------------------------------
# Pure-JAX reference + self-test
# ----------------------------------------------------------------------------
def _swav_loss_ref(high, low, queue=None):
    def ce(z, q):
        logp = jax.nn.log_softmax(z.astype(jnp.float32), axis=-1)
        return jnp.mean(-jnp.sum(q.astype(jnp.float32) * logp, axis=-1))

    num_views = len(high)
    total, count = jnp.float32(0.0), 0
    for i in range(num_views):
        for j in range(num_views):
            if i != j:
                total += ce(high[i], low[j])
                count += 1
        if queue is not None:
            for qo in queue:
                total += ce(high[i], qo)
                count += 1
    return total / count if count > 0 else jnp.float32(0.0)


if __name__ == "__main__":
    key = jax.random.PRNGKey(0)
    N, C = 8, 32            # batch, prototype/class dimension
    n_high, n_low, n_queue = 2, 2, 1

    keys = jax.random.split(key, n_high + n_low + n_queue)
    high = [jax.random.normal(keys[k], (N, C), dtype=jnp.float32)
            for k in range(n_high)]
    low_logits = [jax.random.normal(keys[n_high + k], (N, C), dtype=jnp.float32)
                  for k in range(n_low)]
    low = [jax.nn.softmax(x, axis=-1) for x in low_logits]          # soft codes
    queue = [jax.nn.softmax(
        jax.random.normal(keys[n_high + n_low + k], (N, C), dtype=jnp.float32),
        axis=-1) for k in range(n_queue)]

    # no-queue case
    out1 = jax.block_until_ready(swav_loss(high, low))
    ref1 = _swav_loss_ref(high, low)
    assert jnp.allclose(out1, ref1, rtol=1e-4, atol=1e-4), (out1, ref1)

    # with-queue case
    out2 = jax.block_until_ready(swav_loss(high, low, queue))
    ref2 = _swav_loss_ref(high, low, queue)
    assert jnp.allclose(out2, ref2, rtol=1e-4, atol=1e-4), (out2, ref2)

    print("KERNEL_OK")
</pallas_src>

<mosaic_0001>
module attributes {stable_mosaic.version = 11 : i64} {
  func.func @kernel(%arg0: i32, %arg1: memref<2x8x128xf32, #tpu.memory_space<vmem>>, %arg2: memref<2x8x128xf32, #tpu.memory_space<vmem>>, %arg3: memref<1x1x128xf32, #tpu.memory_space<vmem>>) attributes {dimension_semantics = [#tpu.dimension_semantics<parallel>], iteration_bounds = array<i64: 1>, scalar_prefetch = 0 : i64, scratch_operands = 0 : i64, tpu.core_type = #tpu.core_type<tc>, window_params = [{transform_indices = @transform_0, window_bounds = array<i64: 2, 8, 128>}, {transform_indices = @transform_1, window_bounds = array<i64: 2, 8, 128>}, {transform_indices = @transform_2, window_bounds = array<i64: 1, 1, 128>}]} {
    %cst = arith.constant 0.000000e+00 : f32
    %0 = vector.broadcast %cst : f32 to vector<8x128xf32>
    %c0 = arith.constant 0 : index
    %c0_0 = arith.constant 0 : index
    %c0_1 = arith.constant 0 : index
    %1 = vector.load %arg2[%c0, %c0_0, %c0_1] : memref<2x8x128xf32, #tpu.memory_space<vmem>>, vector<1x8x128xf32>
    %2 = vector.shape_cast %1 : vector<1x8x128xf32> to vector<8x128xf32>
    %cst_2 = arith.constant dense<0.000000e+00> : vector<8xf32>
    %3 = vector.multi_reduction <add>, %2, %cst_2 [1] : vector<8x128xf32> to vector<8xf32>
    %4 = vector.shape_cast %3 : vector<8xf32> to vector<8x1xf32>
    %5 = arith.addf %0, %2 : vector<8x128xf32>
    %c1 = arith.constant 1 : index
    %c0_3 = arith.constant 0 : index
    %c0_4 = arith.constant 0 : index
    %6 = vector.load %arg2[%c1, %c0_3, %c0_4] : memref<2x8x128xf32, #tpu.memory_space<vmem>>, vector<1x8x128xf32>
    %7 = vector.shape_cast %6 : vector<1x8x128xf32> to vector<8x128xf32>
    %cst_5 = arith.constant dense<0.000000e+00> : vector<8xf32>
    %8 = vector.multi_reduction <add>, %7, %cst_5 [1] : vector<8x128xf32> to vector<8xf32>
    %9 = vector.shape_cast %8 : vector<8xf32> to vector<8x1xf32>
    %10 = arith.addf %5, %7 : vector<8x128xf32>
    %11 = arith.addf %4, %9 : vector<8x1xf32>
    %cst_6 = arith.constant 0.000000e+00 : f32
    %12 = vector.broadcast %cst_6 : f32 to vector<8x1xf32>
    %cst_7 = arith.constant 0.000000e+00 : f32
    %13 = vector.broadcast %cst_7 : f32 to vector<8x1xf32>
    %cst_8 = arith.constant 0.000000e+00 : f32
    %14 = vector.broadcast %cst_8 : f32 to vector<8x128xf32>
    %c0_9 = arith.constant 0 : index
    %c0_10 = arith.constant 0 : index
    %c0_11 = arith.constant 0 : index
    %15 = vector.load %arg1[%c0_9, %c0_10, %c0_11] : memref<2x8x128xf32, #tpu.memory_space<vmem>>, vector<1x8x128xf32>
    %16 = vector.shape_cast %15 : vector<1x8x128xf32> to vector<8x128xf32>
    %cst_12 = arith.constant dense<0xFF800000> : vector<8xf32>
    %17 = vector.multi_reduction <maximumf>, %16, %cst_12 [1] : vector<8x128xf32> to vector<8xf32>
    %18 = vector.shape_cast %17 : vector<8xf32> to vector<8x1xf32>
    %19 = vector.broadcast %18 : vector<8x1xf32> to vector<8x128xf32>
    %20 = arith.subf %16, %19 : vector<8x128xf32>
    %21 = math.exp %20 : vector<8x128xf32>
    %cst_13 = arith.constant dense<0.000000e+00> : vector<8xf32>
    %22 = vector.multi_reduction <add>, %21, %cst_13 [1] : vector<8x128xf32> to vector<8xf32>
    %23 = vector.shape_cast %22 : vector<8xf32> to vector<8x1xf32>
    %24 = math.log %23 : vector<8x1xf32>
    %25 = arith.addf %18, %24 : vector<8x1xf32>
    %26 = arith.subf %11, %4 : vector<8x1xf32>
    %27 = arith.mulf %25, %26 : vector<8x1xf32>
    %28 = arith.addf %12, %27 : vector<8x1xf32>
    %c0_14 = arith.constant 0 : index
    %c0_15 = arith.constant 0 : index
    %c0_16 = arith.constant 0 : index
    %29 = vector.load %arg2[%c0_14, %c0_15, %c0_16] : memref<2x8x128xf32, #tpu.memory_space<vmem>>, vector<1x8x128xf32>
    %30 = vector.shape_cast %29 : vector<1x8x128xf32> to vector<8x128xf32>
    %31 = arith.mulf %16, %30 : vector<8x128xf32>
    %cst_17 = arith.constant dense<0.000000e+00> : vector<8xf32>
    %32 = vector.multi_reduction <add>, %31, %cst_17 [1] : vector<8x128xf32> to vector<8xf32>
    %33 = vector.shape_cast %32 : vector<8xf32> to vector<8x1xf32>
    %34 = arith.addf %13, %33 : vector<8x1xf32>
    %35 = arith.addf %14, %16 : vector<8x128xf32>
    %c1_18 = arith.constant 1 : index
    %c0_19 = arith.constant 0 : index
    %c0_20 = arith.constant 0 : index
    %36 = vector.load %arg1[%c1_18, %c0_19, %c0_20] : memref<2x8x128xf32, #tpu.memory_space<vmem>>, vector<1x8x128xf32>
    %37 = vector.shape_cast %36 : vector<1x8x128xf32> to vector<8x128xf32>
    %cst_21 = arith.constant dense<0xFF800000> : vector<8xf32>
    %38 = vector.multi_reduction <maximumf>, %37, %cst_21 [1] : vector<8x128xf32> to vector<8xf32>
    %39 = vector.shape_cast %38 : vector<8xf32> to vector<8x1xf32>
    %40 = vector.broadcast %39 : vector<8x1xf32> to vector<8x128xf32>
    %41 = arith.subf %37, %40 : vector<8x128xf32>
    %42 = math.exp %41 : vector<8x128xf32>
    %cst_22 = arith.constant dense<0.000000e+00> : vector<8xf32>
    %43 = vector.multi_reduction <add>, %42, %cst_22 [1] : vector<8x128xf32> to vector<8xf32>
    %44 = vector.shape_cast %43 : vector<8xf32> to vector<8x1xf32>
    %45 = math.log %44 : vector<8x1xf32>
    %46 = arith.addf %39, %45 : vector<8x1xf32>
    %47 = arith.subf %11, %9 : vector<8x1xf32>
    %48 = arith.mulf %46, %47 : vector<8x1xf32>
    %49 = arith.addf %28, %48 : vector<8x1xf32>
    %c1_23 = arith.constant 1 : index
    %c0_24 = arith.constant 0 : index
    %c0_25 = arith.constant 0 : index
    %50 = vector.load %arg2[%c1_23, %c0_24, %c0_25] : memref<2x8x128xf32, #tpu.memory_space<vmem>>, vector<1x8x128xf32>
    %51 = vector.shape_cast %50 : vector<1x8x128xf32> to vector<8x128xf32>
    %52 = arith.mulf %37, %51 : vector<8x128xf32>
    %cst_26 = arith.constant dense<0.000000e+00> : vector<8xf32>
    %53 = vector.multi_reduction <add>, %52, %cst_26 [1] : vector<8x128xf32> to vector<8xf32>
    %54 = vector.shape_cast %53 : vector<8xf32> to vector<8x1xf32>
    %55 = arith.addf %34, %54 : vector<8x1xf32>
    %56 = arith.addf %35, %37 : vector<8x128xf32>
    %57 = arith.mulf %56, %10 : vector<8x128xf32>
    %cst_27 = arith.constant dense<0.000000e+00> : vector<8xf32>
    %58 = vector.multi_reduction <add>, %57, %cst_27 [1] : vector<8x128xf32> to vector<8xf32>
    %59 = vector.shape_cast %58 : vector<8xf32> to vector<8x1xf32>
    %60 = arith.subf %49, %59 : vector<8x1xf32>
    %61 = arith.addf %60, %55 : vector<8x1xf32>
    %62 = vector.shape_cast %61 : vector<8x1xf32> to vector<1x8x1xf32>
    %cst_28 = arith.constant dense<0.000000e+00> : vector<1xf32>
    %63 = vector.multi_reduction <add>, %62, %cst_28 [1, 2] : vector<1x8x1xf32> to vector<1xf32>
    %64 = vector.shape_cast %63 : vector<1xf32> to vector<1x1x1xf32>
    %65 = vector.extract %64[0, 0, 0] : f32 from vector<1x1x1xf32>
    %66 = vector.broadcast %65 : f32 to vector<1x1x128xf32>
    %c0_29 = arith.constant 0 : index
    %c0_30 = arith.constant 0 : index
    %c0_31 = arith.constant 0 : index
    %67 = vector.load %arg3[%c0_29, %c0_30, %c0_31] : memref<1x1x128xf32, #tpu.memory_space<vmem>>, vector<1x1x128xf32>
    tpu.vector_store %arg3[%c0_29, %c0_30, %c0_31], %66 {strides = array<i32>} : memref<1x1x128xf32, #tpu.memory_space<vmem>>, vector<1x1x128xf32>,
    return
  }
  func.func @transform_0(%arg0: i32) -> (i32, i32, i32) {
    %c0_i32 = arith.constant 0 : i32
    %c0_i32_0 = arith.constant 0 : i32
    %c0_i32_1 = arith.constant 0 : i32
    return %c0_i32, %arg0, %c0_i32_0 : i32, i32, i32
  }
  func.func @transform_1(%arg0: i32) -> (i32, i32, i32) {
    %c0_i32 = arith.constant 0 : i32
    %c0_i32_0 = arith.constant 0 : i32
    %c0_i32_1 = arith.constant 0 : i32
    return %c0_i32, %arg0, %c0_i32_0 : i32, i32, i32
  }
  func.func @transform_2(%arg0: i32) -> (i32, i32, i32) {
    %c0_i32 = arith.constant 0 : i32
    %c0_i32_0 = arith.constant 0 : i32
    %c0_i32_1 = arith.constant 0 : i32
    return %arg0, %c0_i32, %c0_i32_0 : i32, i32, i32
  }
}

</mosaic_0001>

<llo_original>
// kernel: tpu_custom_call.1
$region0: #{tpu_custom_call.1}
  #allocation0 [shape = 'u32[]', space=smem, size = 0x4, offset = 0x4, fixed_abs, tag = 'smem constant byte address 0x4 - core index']
  #allocation1 [shape = 'u32[144,128]{1,0:T(1,128)}', space=vmem, size = 0x12000, scoped, tag = 'internal scratch']
  %s0 = inlined_call_operand.hbm [shape: f32[2,8,128], index: 0, kind: input, shape index: {}]
  %s1 = inlined_call_operand.hbm [shape: f32[2,8,128], index: 1, kind: input, shape index: {}]
  %s2 = inlined_call_operand.hbm [shape: f32[1,1,128], index: 2, kind: output, shape index: {}]
  %s3 = sld [smem:[#allocation0]]
  $region26: #{tpu_custom_call.1} parent=0
    _
  %s5 = ssub.s32 1, %s3
  %s6 = scalar_select 0, %s5, %s3
  $region1: #{tpu_custom_call.1} parent=0
    #allocation2 [shape = 'u8[8192]{0}', space=vmem, size = 0x2000, scoped, tag = 'input window, operand 0, single buffered']
    #allocation3 [shape = 's32[1]{0}', space=sflag, size = 0x4, scoped, tag = 'scoped memory for tpu_custom_call.1']
    #allocation4 [shape = 's32[1]{0}', space=sflag, size = 0x4, scoped, tag = 'scoped memory for tpu_custom_call.1']
    #allocation5 [shape = 'u8[8192]{0}', space=vmem, size = 0x2000, scoped, tag = 'input window, operand 1, single buffered']
    #allocation6 [shape = 's32[1]{0}', space=sflag, size = 0x4, scoped, tag = 'scoped memory for tpu_custom_call.1']
    #allocation7 [shape = 'u8[512]{0}', space=vmem, size = 0x400, scoped, tag = 'output window, operand 0, single buffered']
    %7 = vsyncpa [#allocation3], 0
    %8 = vsyncpa [#allocation6], 0
    %9 = vsyncpa [#allocation4], 0
    // Predicated region
    $region2: #{tpu_custom_call.1} parent=1 // pred_check
      _
    $region3: #{tpu_custom_call.1} parent=1 // pred_check_branch
      %11 = sbr.rel (0) target = $region5
    $region4: #{tpu_custom_call.1} parent=1 // pred_region
      %s13 = ssub.s32 256, 256
      %14 = vsyncadd [#allocation3], %s13
      %s15 = sshll.u32 [#allocation2], 4
      %s16 = int_to_ptr.vmem [resolvable:$true] %s15
      %21 = dma.hbm_to_vmem [thread:$0]  %s0, 256, %s16, [#allocation3], 128, 128, 8
    $region5: #{tpu_custom_call.1} parent=1 // pred_fallthru
      _
    // Predicated region
    $region6: #{tpu_custom_call.1} parent=1 // pred_check
      _
    $region7: #{tpu_custom_call.1} parent=1 // pred_check_branch
      %23 = sbr.rel (0) target = $region9
    $region8: #{tpu_custom_call.1} parent=1 // pred_region
      %s25 = ssub.s32 256, 256
      %26 = vsyncadd [#allocation6], %s25
      %s27 = sshll.u32 [#allocation5], 4
      %s28 = int_to_ptr.vmem [resolvable:$true] %s27
      %33 = dma.hbm_to_vmem [thread:$0]  %s1, 256, %s28, [#allocation6], 128, 128, 8
    $region9: #{tpu_custom_call.1} parent=1 // pred_fallthru
      _
    // Predicated region
    $region10: #{tpu_custom_call.1} parent=1 // pred_check
      _
    $region11: #{tpu_custom_call.1} parent=1 // pred_check_branch
      %35 = sbr.rel (0) target = $region13
    $region12: #{tpu_custom_call.1} parent=1 // pred_region
      %36 = dma.done [#allocation3], 256
    $region13: #{tpu_custom_call.1} parent=1 // pred_fallthru
      _
    // Predicated region
    $region14: #{tpu_custom_call.1} parent=1 // pred_check
      _
    $region15: #{tpu_custom_call.1} parent=1 // pred_check_branch
      %38 = sbr.rel (0) target = $region17
    $region16: #{tpu_custom_call.1} parent=1 // pred_region
      %39 = dma.done [#allocation6], 256
    $region17: #{tpu_custom_call.1} parent=1 // pred_fallthru
      _
    %v40 = vld [vmem:[#allocation5] sm:$0xff]
    %41 = vadd.xlane.f32.xlu0 %v40
    %v42 = vpop.xlane.xlu0 %41
    %v43 = vadd.f32 %v40, 0.0
    %s44 = scalar_lea.vmem [#allocation5], 8
    %v45 = vld [vmem:[%s44] sm:$0xff]
    %46 = vadd.xlane.f32.xlu0 %v45
    %v47 = vpop.xlane.xlu0 %46
    %v48 = vadd.f32 %v43, %v45
    %v49 = vadd.f32 %v42, %v47
    %v50 = vld [vmem:[#allocation2] sm:$0xff]
    %51 = vmax.xlane.f32.xlu0 %v50
    %v52 = vpop.xlane.xlu0 %51
    %v53 = vsub.f32 %v50, %v52
    %v54 = vmul.f32 %v53, 1.442695
    %v55 = vpow.pop %v54
    %56 = vadd.xlane.f32.xlu0 %v55
    %v57 = vpop.xlane.xlu0 %56
    %v58 = vlog2.pop %v57
    %v59 = vmul.f32 %v58, 0.6931472
    %v60 = vadd.f32 %v52, %v59
    %v61 = vsub.f32 %v49, %v42
    %v62 = vmul.f32 %v60, %v61
    %v63 = vadd.f32 %v62, 0.0
    %v64 = vmul.f32 %v50, %v40
    %65 = vadd.xlane.f32.xlu0 %v64
    %v66 = vpop.xlane.xlu0 %65
    %v67 = vadd.f32 %v66, 0.0
    %v68 = vadd.f32 %v50, 0.0
    %s69 = scalar_lea.vmem [#allocation2], 8
    %v70 = vld [vmem:[%s69] sm:$0xff]
    %71 = vmax.xlane.f32.xlu0 %v70
    %v72 = vpop.xlane.xlu0 %71
    %v73 = vsub.f32 %v70, %v72
    %v74 = vmul.f32 %v73, 1.442695
    %v75 = vpow.pop %v74
    %76 = vadd.xlane.f32.xlu0 %v75
    %v77 = vpop.xlane.xlu0 %76
    %v78 = vlog2.pop %v77
    %v79 = vmul.f32 %v78, 0.6931472
    %v80 = vadd.f32 %v72, %v79
    %v81 = vsub.f32 %v49, %v47
    %v82 = vmul.f32 %v80, %v81
    %v83 = vadd.f32 %v63, %v82
    %v84 = vmul.f32 %v70, %v45
    %85 = vadd.xlane.f32.xlu0 %v84
    %v86 = vpop.xlane.xlu0 %85
    %v87 = vadd.f32 %v67, %v86
    %v88 = vadd.f32 %v68, %v70
    %v89 = vmul.f32 %v88, %v48
    %90 = vadd.xlane.f32.xlu0 %v89
    %v91 = vpop.xlane.xlu0 %90
    %v92 = vsub.f32 %v83, %v91
    %v93 = vadd.f32 %v92, %v87
    %vm94 = vcmask 7168
    %v95 = vsel %vm94, %v93, 0.0
    %96 = vadd.xlane.f32.xlu0 %v95
    %v97 = vpop.xlane.xlu0 %96
    %v98 = vrot.slane %v97, 4
    %v99 = vadd.f32 %v97, %v98
    %v100 = vrot.slane %v99, 2
    %v101 = vadd.f32 %v99, %v100
    %v102 = vrot.slane %v101, 1
    %v103 = vadd.f32 %v101, %v102
    %s104 = vtos %v103
    %v105 = vstv %s104
    %106 = vst [vmem:[#allocation7] sm:$0x1] %v105
    // Predicated region
    $region18: #{tpu_custom_call.1} parent=1 // pred_check
      _
    $region19: #{tpu_custom_call.1} parent=1 // pred_check_branch
      %108 = sbr.rel (0) target = $region21
    $region20: #{tpu_custom_call.1} parent=1 // pred_region
      %s110 = ssub.s32 16, 16
      %111 = vsyncadd [#allocation4], %s110
      %s113 = sshll.u32 [#allocation7], 4
      %s114 = int_to_ptr.vmem [resolvable:$true] %s113
      %116 = dma.vmem_to_hbm [thread:$0]  %s114, 16, %s2, [#allocation4]
    $region21: #{tpu_custom_call.1} parent=1 // pred_fallthru
      _
    // Predicated region
    $region22: #{tpu_custom_call.1} parent=1 // pred_check
      _
    $region23: #{tpu_custom_call.1} parent=1 // pred_check_branch
      %118 = sbr.rel (0) target = $region25
    $region24: #{tpu_custom_call.1} parent=1 // pred_region
      %119 = dma.done [#allocation4], 16
    $region25: #{tpu_custom_call.1} parent=1 // pred_fallthru
      _
    %120 = vsyncpa [#allocation3], 1
    %121 = vsyncpa [#allocation6], 1
    %122 = vsyncpa [#allocation4], 1

</llo_original>
